<compile_context>
chip_gen: v5e
topology: v5e:2x2
jax: 0.10.0
libtpu: 0.0.40
codegen_flags: <defaults>
</compile_context>

<pallas_src>
import jax
import jax.numpy as jnp
from jax.experimental import pallas as pl
from jax.experimental.pallas import tpu as pltpu


def _disc_kernel(z_ref, w1_ref, b1_ref, w2_ref, b2_ref, w3_ref, b3_ref, out_ref):
    # Layer 1: Linear(n_classes -> 512) + LeakyReLU(0.2)  (bf16 MXU inputs, f32 acc)
    h = jnp.dot(z_ref[...].astype(jnp.bfloat16), w1_ref[...],
                preferred_element_type=jnp.float32) + b1_ref[...]
    h = jnp.where(h > 0, h, 0.2 * h)

    # Layer 2: Linear(512 -> 256) + LeakyReLU(0.2)
    h = jnp.dot(h.astype(jnp.bfloat16), w2_ref[...],
                preferred_element_type=jnp.float32) + b2_ref[...]
    h = jnp.where(h > 0, h, 0.2 * h)

    # Layer 3: Linear(256 -> 1). N=1 matmul would waste the MXU and add drain
    # latency at the tail; do it as a VPU multiply + lane (XLU) reduction instead.
    logit = jnp.sum(h * w3_ref[...], axis=-1, keepdims=True) + b3_ref[...]

    # Sigmoid: exp and approx reciprocal both run on the EUP slot.
    out_ref[...] = pl.reciprocal(1.0 + jnp.exp(-logit), approx=True)


def discriminator_category(z, params):
    """z: [B, n_classes] float32 -> validity: [B, 1] float32."""
    w1, b1, w2, b2, w3, b3 = params
    B, C = z.shape

    # Batch tile: MXU-height sized for real batches, rounded-to-8 for tiny ones.
    TM = 256 if B >= 256 else max(8, ((B + 7) // 8) * 8)
    Bp = ((B + TM - 1) // TM) * TM
    if Bp != B:
        z = jnp.pad(z, ((0, Bp - B), (0, 0)))

    # Weights/biases: full-array blocks with constant index_maps -> DMA'd once,
    # stay VMEM-resident across all batch-tile steps.
    pinned = lambda a: pl.BlockSpec(a.shape, lambda i: (0,) * a.ndim)

    out = pl.pallas_call(
        _disc_kernel,
        out_shape=jax.ShapeDtypeStruct((Bp, 1), jnp.float32),
        grid=(Bp // TM,),
        in_specs=[
            pl.BlockSpec((TM, C), lambda i: (i, 0)),   # z: tiled over batch
            pinned(w1), pinned(b1),
            pinned(w2), pinned(b2),
            pinned(w3), pinned(b3),
        ],
        out_specs=pl.BlockSpec((TM, 1), lambda i: (i, 0)),
        compiler_params=pltpu.CompilerParams(
            dimension_semantics=("parallel",),  # megacore sharding on v7x
        ),
    )(z, w1, b1, w2, b2, w3, b3)

    return out[:B]


def init_params(key, n_classes):
    """Deterministic PyTorch-Linear-style init (uniform +/- 1/sqrt(fan_in)).

    Layout: w1 [C,512] bf16, b1 [1,512] f32, w2 [512,256] bf16, b2 [1,256] f32,
            w3 [1,256] f32 (row vector for the VPU-reduce layer), b3 [1,1] f32.
    """
    dims = [(n_classes, 512), (512, 256), (256, 1)]
    raw = []
    for i, (fan_in, fan_out) in enumerate(dims):
        kw, kb = jax.random.split(jax.random.fold_in(key, i))
        bound = 1.0 / jnp.sqrt(float(fan_in))
        w = jax.random.uniform(kw, (fan_in, fan_out), jnp.float32, -bound, bound)
        b = jax.random.uniform(kb, (1, fan_out), jnp.float32, -bound, bound)
        raw += [w, b]
    w1, b1, w2, b2, w3, b3 = raw
    return (
        w1.astype(jnp.bfloat16), b1,
        w2.astype(jnp.bfloat16), b2,
        w3.reshape(1, -1), b3,  # w3 stored as [1, 256] for the lane reduction
    )


def reference(z, params):
    """Pure-JAX reference mirroring the kernel's bf16 dot inputs / f32 accumulate."""
    w1, b1, w2, b2, w3, b3 = params
    h = jnp.dot(z.astype(jnp.bfloat16), w1, preferred_element_type=jnp.float32) + b1
    h = jnp.where(h > 0, h, 0.2 * h)
    h = jnp.dot(h.astype(jnp.bfloat16), w2, preferred_element_type=jnp.float32) + b2
    h = jnp.where(h > 0, h, 0.2 * h)
    logit = jnp.sum(h * w3, axis=-1, keepdims=True) + b3
    return jax.nn.sigmoid(logit)


if __name__ == "__main__":
    key = jax.random.PRNGKey(0)
    n_classes = 10   # args.n_classes (synthetic choice)
    batch = 8

    kz, kp = jax.random.split(key)
    z = jax.random.normal(kz, (batch, n_classes), jnp.float32)
    params = init_params(kp, n_classes)

    out = discriminator_category(z, params)
    out = jax.block_until_ready(out)

    ref = reference(z, params)
    assert out.shape == (batch, 1)
    assert jnp.all(jnp.isfinite(out))
    # Tolerance covers bf16 dot inputs + EUP approx reciprocal on a [0,1] output.
    assert jnp.allclose(out, ref, atol=1e-2, rtol=1e-2), "mismatch vs reference"
    print("KERNEL_OK")
</pallas_src>

<mosaic_0001>
module attributes {stable_mosaic.version = 11 : i64} {
  func.func @_disc_kernel(%arg0: i32, %arg1: memref<8x10xf32, #tpu.memory_space<vmem>>, %arg2: memref<10x512xbf16, #tpu.memory_space<vmem>>, %arg3: memref<1x512xf32, #tpu.memory_space<vmem>>, %arg4: memref<512x256xbf16, #tpu.memory_space<vmem>>, %arg5: memref<1x256xf32, #tpu.memory_space<vmem>>, %arg6: memref<1x256xf32, #tpu.memory_space<vmem>>, %arg7: memref<1x1xf32, #tpu.memory_space<vmem>>, %arg8: memref<8x1xf32, #tpu.memory_space<vmem>>) attributes {dimension_semantics = [#tpu.dimension_semantics<parallel>], iteration_bounds = array<i64: 1>, scalar_prefetch = 0 : i64, scratch_operands = 0 : i64, tpu.core_type = #tpu.core_type<tc>, window_params = [{transform_indices = @transform_0, window_bounds = array<i64: 8, 10>}, {pipeline_mode = #tpu.pipeline_mode<synchronous>, transform_indices = @transform_1, window_bounds = array<i64: 10, 512>}, {pipeline_mode = #tpu.pipeline_mode<synchronous>, transform_indices = @transform_2, window_bounds = array<i64: 1, 512>}, {pipeline_mode = #tpu.pipeline_mode<synchronous>, transform_indices = @transform_3, window_bounds = array<i64: 512, 256>}, {pipeline_mode = #tpu.pipeline_mode<synchronous>, transform_indices = @transform_4, window_bounds = array<i64: 1, 256>}, {pipeline_mode = #tpu.pipeline_mode<synchronous>, transform_indices = @transform_5, window_bounds = array<i64: 1, 256>}, {pipeline_mode = #tpu.pipeline_mode<synchronous>, transform_indices = @transform_6, window_bounds = array<i64: 1, 1>}, {transform_indices = @transform_7, window_bounds = array<i64: 8, 1>}]} {
    %c0 = arith.constant 0 : index
    %c0_0 = arith.constant 0 : index
    %0 = vector.load %arg1[%c0, %c0_0] : memref<8x10xf32, #tpu.memory_space<vmem>>, vector<8x10xf32>
    %1 = arith.truncf %0 : vector<8x10xf32> to vector<8x10xbf16>
    %c0_1 = arith.constant 0 : index
    %c0_2 = arith.constant 0 : index
    %2 = vector.load %arg2[%c0_1, %c0_2] : memref<10x512xbf16, #tpu.memory_space<vmem>>, vector<10x512xbf16>
    %cst = arith.constant dense<0.000000e+00> : vector<8x512xf32>
    %3 = tpu.matmul %1, %2, %cst {dimension_numbers = #tpu.dot_dimension_numbers<[1], [0], [0], [1], [0, 0, 1, 1], [], []>} : vector<8x10xbf16>, vector<10x512xbf16>, vector<8x512xf32> -> vector<8x512xf32>
    %c0_3 = arith.constant 0 : index
    %c0_4 = arith.constant 0 : index
    %4 = vector.load %arg3[%c0_3, %c0_4] : memref<1x512xf32, #tpu.memory_space<vmem>>, vector<1x512xf32>
    %5 = vector.broadcast %4 : vector<1x512xf32> to vector<8x512xf32>
    %6 = arith.addf %3, %5 : vector<8x512xf32>
    %cst_5 = arith.constant 0.000000e+00 : f32
    %7 = vector.broadcast %cst_5 : f32 to vector<8x512xf32>
    %8 = arith.cmpf ogt, %6, %7 : vector<8x512xf32>
    %cst_6 = arith.constant 2.000000e-01 : f32
    %9 = vector.broadcast %cst_6 : f32 to vector<8x512xf32>
    %10 = arith.mulf %9, %6 : vector<8x512xf32>
    %11 = arith.select %8, %6, %10 : vector<8x512xi1>, vector<8x512xf32>
    %12 = arith.truncf %11 : vector<8x512xf32> to vector<8x512xbf16>
    %c0_7 = arith.constant 0 : index
    %c0_8 = arith.constant 0 : index
    %13 = vector.load %arg4[%c0_7, %c0_8] : memref<512x256xbf16, #tpu.memory_space<vmem>>, vector<512x256xbf16>
    %cst_9 = arith.constant dense<0.000000e+00> : vector<8x256xf32>
    %14 = tpu.matmul %12, %13, %cst_9 {dimension_numbers = #tpu.dot_dimension_numbers<[1], [0], [0], [1], [0, 0, 1, 1], [], []>} : vector<8x512xbf16>, vector<512x256xbf16>, vector<8x256xf32> -> vector<8x256xf32>
    %c0_10 = arith.constant 0 : index
    %c0_11 = arith.constant 0 : index
    %15 = vector.load %arg5[%c0_10, %c0_11] : memref<1x256xf32, #tpu.memory_space<vmem>>, vector<1x256xf32>
    %16 = vector.broadcast %15 : vector<1x256xf32> to vector<8x256xf32>
    %17 = arith.addf %14, %16 : vector<8x256xf32>
    %cst_12 = arith.constant 0.000000e+00 : f32
    %18 = vector.broadcast %cst_12 : f32 to vector<8x256xf32>
    %19 = arith.cmpf ogt, %17, %18 : vector<8x256xf32>
    %cst_13 = arith.constant 2.000000e-01 : f32
    %20 = vector.broadcast %cst_13 : f32 to vector<8x256xf32>
    %21 = arith.mulf %20, %17 : vector<8x256xf32>
    %22 = arith.select %19, %17, %21 : vector<8x256xi1>, vector<8x256xf32>
    %c0_14 = arith.constant 0 : index
    %c0_15 = arith.constant 0 : index
    %23 = vector.load %arg6[%c0_14, %c0_15] : memref<1x256xf32, #tpu.memory_space<vmem>>, vector<1x256xf32>
    %24 = vector.broadcast %23 : vector<1x256xf32> to vector<8x256xf32>
    %25 = arith.mulf %22, %24 : vector<8x256xf32>
    %cst_16 = arith.constant dense<0.000000e+00> : vector<8xf32>
    %26 = vector.multi_reduction <add>, %25, %cst_16 [1] : vector<8x256xf32> to vector<8xf32>
    %27 = vector.shape_cast %26 : vector<8xf32> to vector<8x1xf32>
    %c0_17 = arith.constant 0 : index
    %c0_18 = arith.constant 0 : index
    %28 = vector.load %arg7[%c0_17, %c0_18] : memref<1x1xf32, #tpu.memory_space<vmem>>, vector<1x1xf32>
    %29 = vector.broadcast %28 : vector<1x1xf32> to vector<8x1xf32>
    %30 = arith.addf %27, %29 : vector<8x1xf32>
    %cst_19 = arith.constant 0.000000e+00 : f32
    %31 = vector.broadcast %cst_19 : f32 to vector<8x1xf32>
    %32 = arith.subf %31, %30 : vector<8x1xf32>
    %33 = math.exp %32 : vector<8x1xf32>
    %cst_20 = arith.constant 1.000000e+00 : f32
    %34 = vector.broadcast %cst_20 : f32 to vector<8x1xf32>
    %35 = arith.addf %34, %33 : vector<8x1xf32>
    %36 = tpu.reciprocal %35 {approx = true} : vector<8x1xf32> -> vector<8x1xf32>
    %c0_21 = arith.constant 0 : index
    %c0_22 = arith.constant 0 : index
    %37 = vector.load %arg8[%c0_21, %c0_22] : memref<8x1xf32, #tpu.memory_space<vmem>>, vector<8x1xf32>
    tpu.vector_store %arg8[%c0_21, %c0_22], %36 {strides = array<i32>} : memref<8x1xf32, #tpu.memory_space<vmem>>, vector<8x1xf32>,
    return
  }
  func.func @transform_0(%arg0: i32) -> (i32, i32) {
    %c0_i32 = arith.constant 0 : i32
    %c0_i32_0 = arith.constant 0 : i32
    return %arg0, %c0_i32 : i32, i32
  }
  func.func @transform_1(%arg0: i32) -> (i32, i32) {
    %c0_i32 = arith.constant 0 : i32
    %c0_i32_0 = arith.constant 0 : i32
    %c0_i32_1 = arith.constant 0 : i32
    return %c0_i32, %c0_i32_0 : i32, i32
  }
  func.func @transform_2(%arg0: i32) -> (i32, i32) {
    %c0_i32 = arith.constant 0 : i32
    %c0_i32_0 = arith.constant 0 : i32
    %c0_i32_1 = arith.constant 0 : i32
    return %c0_i32, %c0_i32_0 : i32, i32
  }
  func.func @transform_3(%arg0: i32) -> (i32, i32) {
    %c0_i32 = arith.constant 0 : i32
    %c0_i32_0 = arith.constant 0 : i32
    %c0_i32_1 = arith.constant 0 : i32
    return %c0_i32, %c0_i32_0 : i32, i32
  }
  func.func @transform_4(%arg0: i32) -> (i32, i32) {
    %c0_i32 = arith.constant 0 : i32
    %c0_i32_0 = arith.constant 0 : i32
    %c0_i32_1 = arith.constant 0 : i32
    return %c0_i32, %c0_i32_0 : i32, i32
  }
  func.func @transform_5(%arg0: i32) -> (i32, i32) {
    %c0_i32 = arith.constant 0 : i32
    %c0_i32_0 = arith.constant 0 : i32
    %c0_i32_1 = arith.constant 0 : i32
    return %c0_i32, %c0_i32_0 : i32, i32
  }
  func.func @transform_6(%arg0: i32) -> (i32, i32) {
    %c0_i32 = arith.constant 0 : i32
    %c0_i32_0 = arith.constant 0 : i32
    %c0_i32_1 = arith.constant 0 : i32
    return %c0_i32, %c0_i32_0 : i32, i32
  }
  func.func @transform_7(%arg0: i32) -> (i32, i32) {
    %c0_i32 = arith.constant 0 : i32
    %c0_i32_0 = arith.constant 0 : i32
    return %arg0, %c0_i32 : i32, i32
  }
}

</mosaic_0001>

<llo_original>
// kernel: tpu_custom_call.1
$region0: #{tpu_custom_call.1}
  #allocation0 [shape = 'u32[]', space=smem, size = 0x4, offset = 0x4, fixed_abs, tag = 'smem constant byte address 0x4 - core index']
  #allocation1 [shape = 'u32[72,128]{1,0:T(1,128)}', space=vmem, size = 0x9000, scoped, tag = 'internal scratch']
  #allocation2 [shape = 'f32[1,1]{1,0:T(1,128)S(1)}', space=vmem, size = 0x200, scoped, tag = 'scoped memory for tpu_custom_call.1']
  %s0 = inlined_call_operand.hbm [shape: f32[8,10], index: 0, kind: input, shape index: {}]
  %s1 = inlined_call_operand.hbm [shape: bf16[10,512], index: 1, kind: input, shape index: {}]
  %s2 = inlined_call_operand.hbm [shape: f32[1,512], index: 2, kind: input, shape index: {}]
  %s3 = inlined_call_operand.hbm [shape: bf16[512,256], index: 3, kind: input, shape index: {}]
  %s4 = inlined_call_operand.vmem [shape: f32[1,256], index: 4, kind: input, shape index: {}]
  %s5 = inlined_call_operand.vmem [shape: f32[1,256], index: 5, kind: input, shape index: {}]
  %s6 = inlined_call_operand.<no memory space> [shape: f32[1,1], index: 6, kind: input, shape index: {}]
  %s7 = inlined_call_operand.vmem [shape: f32[8,1], index: 7, kind: output, shape index: {}]
  %s8 = sld [smem:[#allocation0]]
  $region54: #{tpu_custom_call.1} parent=0
    _
  %s10 = ssub.s32 1, %s8
  %s11 = scalar_select 0, %s10, %s8
  %v12 = vstv %s6
  %13 = vst [vmem:[#allocation2] sm:$0x1] %v12
  $region1: #{tpu_custom_call.1} parent=0
    #allocation3 [shape = 'u8[4096]{0}', space=vmem, size = 0x1000, scoped, tag = 'input window, operand 0, single buffered']
    #allocation4 [shape = 's32[1]{0}', space=sflag, size = 0x4, scoped, tag = 'scoped memory for tpu_custom_call.1']
    #allocation5 [shape = 'u8[16384]{0}', space=vmem, size = 0x4000, scoped, tag = 'input window, operand 1, single buffered']
    #allocation6 [shape = 's32[1]{0}', space=sflag, size = 0x4, scoped, tag = 'scoped memory for tpu_custom_call.1']
    #allocation7 [shape = 'u8[2048]{0}', space=vmem, size = 0x800, scoped, tag = 'input window, operand 2, single buffered']
    #allocation8 [shape = 'u8[262144]{0}', space=vmem, size = 0x40000, scoped, tag = 'input window, operand 3, single buffered']
    #allocation9 [shape = 's32[1]{0}', space=sflag, size = 0x4, scoped, tag = 'scoped memory for tpu_custom_call.1']
    %14 = vsyncpa [#allocation4], 0
    %15 = vsyncpa [#allocation6], 0
    %16 = vsyncpa [#allocation9], 0
    // Predicated region
    $region2: #{tpu_custom_call.1} parent=1 // pred_check
      _
    $region3: #{tpu_custom_call.1} parent=1 // pred_check_branch
      %18 = sbr.rel (0) target = $region5
    $region4: #{tpu_custom_call.1} parent=1 // pred_region
      %20 = vsyncadd [#allocation4], 0
      %s22 = sshll.u32 %s0, 4
      %s23 = int_to_ptr.hbm [resolvable:$true] %s22
      %s24 = sshll.u32 [#allocation3], 4
      %s25 = int_to_ptr.vmem [resolvable:$true] %s24
      %27 = dma.hbm_to_vmem [thread:$0]  %s23, 128, %s25, [#allocation4]
    $region5: #{tpu_custom_call.1} parent=1 // pred_fallthru
      _
    // Predicated region
    $region6: #{tpu_custom_call.1} parent=1 // pred_check
      _
    $region7: #{tpu_custom_call.1} parent=1 // pred_check_branch
      %29 = sbr.rel (0) target = $region9
    $region8: #{tpu_custom_call.1} parent=1 // pred_region
      %31 = vsyncadd [#allocation6], 0
      %s32 = sshll.u32 %s1, 4
      %s33 = int_to_ptr.hbm [resolvable:$true] %s32
      %s34 = sshll.u32 [#allocation5], 4
      %s35 = int_to_ptr.vmem [resolvable:$true] %s34
      %40 = dma.hbm_to_vmem [thread:$0]  %s33, 512, %s35, [#allocation6], 256, 256, 16
    $region9: #{tpu_custom_call.1} parent=1 // pred_fallthru
      _
    // Predicated region
    $region10: #{tpu_custom_call.1} parent=1 // pred_check
      _
    $region11: #{tpu_custom_call.1} parent=1 // pred_check_branch
      %42 = sbr.rel (0) target = $region13
    $region12: #{tpu_custom_call.1} parent=1 // pred_region
      %44 = vsyncadd [#allocation6], 0
      %s46 = sshll.u32 %s2, 4
      %s47 = int_to_ptr.hbm [resolvable:$true] %s46
      %s48 = sshll.u32 [#allocation7], 4
      %s49 = int_to_ptr.vmem [resolvable:$true] %s48
      %51 = dma.hbm_to_vmem [thread:$0]  %s47, 64, %s49, [#allocation6]
    $region13: #{tpu_custom_call.1} parent=1 // pred_fallthru
      _
    // Predicated region
    $region14: #{tpu_custom_call.1} parent=1 // pred_check
      _
    $region15: #{tpu_custom_call.1} parent=1 // pred_check_branch
      %53 = sbr.rel (0) target = $region17
    $region16: #{tpu_custom_call.1} parent=1 // pred_region
      %55 = vsyncadd [#allocation9], 0
      %s56 = sshll.u32 %s3, 4
      %s57 = int_to_ptr.hbm [resolvable:$true] %s56
      %s58 = sshll.u32 [#allocation8], 4
      %s59 = int_to_ptr.vmem [resolvable:$true] %s58
      %64 = dma.hbm_to_vmem [thread:$0]  %s57, 8192, %s59, [#allocation9], 128, 128, 8
    $region17: #{tpu_custom_call.1} parent=1 // pred_fallthru
      _
    // Predicated region
    $region18: #{tpu_custom_call.1} parent=1 // pred_check
      _
    $region19: #{tpu_custom_call.1} parent=1 // pred_check_branch
      %66 = sbr.rel (0) target = $region21
    $region20: #{tpu_custom_call.1} parent=1 // pred_region
      _
    $region21: #{tpu_custom_call.1} parent=1 // pred_fallthru
      _
    // Predicated region
    $region22: #{tpu_custom_call.1} parent=1 // pred_check
      _
    $region23: #{tpu_custom_call.1} parent=1 // pred_check_branch
      %68 = sbr.rel (0) target = $region25
    $region24: #{tpu_custom_call.1} parent=1 // pred_region
      _
    $region25: #{tpu_custom_call.1} parent=1 // pred_fallthru
      _
    // Predicated region
    $region26: #{tpu_custom_call.1} parent=1 // pred_check
      _
    $region27: #{tpu_custom_call.1} parent=1 // pred_check_branch
      %70 = sbr.rel (0) target = $region29
    $region28: #{tpu_custom_call.1} parent=1 // pred_region
      _
    $region29: #{tpu_custom_call.1} parent=1 // pred_fallthru
      _
    // Predicated region
    $region30: #{tpu_custom_call.1} parent=1 // pred_check
      _
    $region31: #{tpu_custom_call.1} parent=1 // pred_check_branch
      %72 = sbr.rel (0) target = $region33
    $region32: #{tpu_custom_call.1} parent=1 // pred_region
      %74 = dma.done [#allocation4], 128
    $region33: #{tpu_custom_call.1} parent=1 // pred_fallthru
      _
    // Predicated region
    $region34: #{tpu_custom_call.1} parent=1 // pred_check
      _
    $region35: #{tpu_custom_call.1} parent=1 // pred_check_branch
      %76 = sbr.rel (0) target = $region37
    $region36: #{tpu_custom_call.1} parent=1 // pred_region
      %78 = dma.done [#allocation6], 512
    $region37: #{tpu_custom_call.1} parent=1 // pred_fallthru
      _
    // Predicated region
    $region38: #{tpu_custom_call.1} parent=1 // pred_check
      _
    $region39: #{tpu_custom_call.1} parent=1 // pred_check_branch
      %80 = sbr.rel (0) target = $region41
    $region40: #{tpu_custom_call.1} parent=1 // pred_region
      %82 = dma.done [#allocation6], 64
    $region41: #{tpu_custom_call.1} parent=1 // pred_fallthru
      _
    // Predicated region
    $region42: #{tpu_custom_call.1} parent=1 // pred_check
      _
    $region43: #{tpu_custom_call.1} parent=1 // pred_check_branch
      %84 = sbr.rel (0) target = $region45
    $region44: #{tpu_custom_call.1} parent=1 // pred_region
      %86 = dma.done [#allocation9], 8192
    $region45: #{tpu_custom_call.1} parent=1 // pred_fallthru
      _
    %v88 = vld [vmem:[#allocation3] sm:$0xff]
    %v89 = vpack.c.bf16 %v88, %v88
    %v90 = vld [vmem:[#allocation5] sm:$0xff]
    %v91 = vld [vmem:[#allocation5 + $0x8] sm:$0xff]
    %v92 = vld [vmem:[#allocation5 + $0x10] sm:$0x11]
    %v93 = vld [vmem:[#allocation5 + $0x18] sm:$0x11]
    %v94 = vld [vmem:[#allocation7] sm:$0xf]
    %v96 = vperm.slane %v94, 0
    %v97 = vperm.slane %v94, 1
    %v98 = vperm.slane %v94, 2
    %v99 = vperm.slane %v94, 3
    %v108 = vunpack.c.l.b16 %v90
    %v109 = vunpack.c.h.b16 %v90
    %v110 = vunpack.c.l.b16 %v91
    %v111 = vunpack.c.h.b16 %v91
    %v112 = vunpack.c.l.b16 %v92
    %v113 = vunpack.c.h.b16 %v92
    %v114 = vunpack.c.l.b16 %v93
    %v115 = vunpack.c.h.b16 %v93
    %v116 = vpack.c.b16 %v112, %v108
    %v117 = vpack.c.b16 %v113, %v109
    %v118 = vpack.c.b16 %v114, %v110
    %v119 = vpack.c.b16 %v115, %v111
    %vm120 = vcmask 80896
    %v122 = vsel %vm120, %v89, 0
    %vm124 = vcmask 1044480
    %v126 = vsel %vm124, %v116, 0
    %v129 = vsel %vm124, %v117, 0
    %v132 = vsel %vm124, %v118, 0
    %v135 = vsel %vm124, %v119, 0
    %137 = vmatpush.bf16.msra.mxu0 0
    %138 = vmatpush.bf16.msra.mxu0 0
    %139 = vmatpush.bf16.msra.mxu0 0
    %140 = vmatpush.bf16.msra.mxu0 0
    %141 = vmatpush.bf16.msra.mxu0 0
    %142 = vmatpush.bf16.msra.mxu0 0
    %143 = vmatpush.bf16.msra.mxu0 0
    %144 = vmatpush.bf16.msra.mxu0 %v126
    %145 = vmatmul.bf16.gmra.mxu0 %v122
    %v146 = vpop.f32.mrf.mxu0
    %v147 = vadd.f32 %v96, %v146
    %v148 = vpop.f32.mrf.mxu0
    %149 = vdwg.mxu0
    %150 = vmatpush.bf16.msra.mxu0 0
    %151 = vmatpush.bf16.msra.mxu0 0
    %152 = vmatpush.bf16.msra.mxu0 0
    %153 = vmatpush.bf16.msra.mxu0 0
    %154 = vmatpush.bf16.msra.mxu0 0
    %155 = vmatpush.bf16.msra.mxu0 0
    %156 = vmatpush.bf16.msra.mxu0 0
    %157 = vmatpush.bf16.msra.mxu0 %v129
    %158 = vmatmul.bf16.gmra.mxu0 %v122
    %v159 = vpop.f32.mrf.mxu0
    %v160 = vadd.f32 %v97, %v159
    %v161 = vpop.f32.mrf.mxu0
    %162 = vdwg.mxu0
    %163 = vmatpush.bf16.msra.mxu0 0
    %164 = vmatpush.bf16.msra.mxu0 0
    %165 = vmatpush.bf16.msra.mxu0 0
    %166 = vmatpush.bf16.msra.mxu0 0
    %167 = vmatpush.bf16.msra.mxu0 0
    %168 = vmatpush.bf16.msra.mxu0 0
    %169 = vmatpush.bf16.msra.mxu0 0
    %170 = vmatpush.bf16.msra.mxu0 %v132
    %171 = vmatmul.bf16.gmra.mxu0 %v122
    %v172 = vpop.f32.mrf.mxu0
    %v173 = vadd.f32 %v98, %v172
    %v174 = vpop.f32.mrf.mxu0
    %175 = vdwg.mxu0
    %176 = vmatpush.bf16.msra.mxu0 0
    %177 = vmatpush.bf16.msra.mxu0 0
    %178 = vmatpush.bf16.msra.mxu0 0
    %179 = vmatpush.bf16.msra.mxu0 0
    %180 = vmatpush.bf16.msra.mxu0 0
    %181 = vmatpush.bf16.msra.mxu0 0
    %182 = vmatpush.bf16.msra.mxu0 0
    %183 = vmatpush.bf16.msra.mxu0 %v135
    %184 = vmatmul.bf16.gmra.mxu0 %v122
    %v185 = vpop.f32.mrf.mxu0
    %v186 = vadd.f32 %v99, %v185
    %v187 = vpop.f32.mrf.mxu0
    %188 = vdwg.mxu0
    %vm189 = vcmp.gt.f32.partialorder %v147, 0.0
    %vm190 = vcmp.gt.f32.partialorder %v160, 0.0
    %vm191 = vcmp.gt.f32.partialorder %v173, 0.0
    %vm192 = vcmp.gt.f32.partialorder %v186, 0.0
    %v193 = vmul.f32 %v147, 0.2
    %v194 = vmul.f32 %v160, 0.2
    %v195 = vmul.f32 %v173, 0.2
    %v196 = vmul.f32 %v186, 0.2
    %v197 = vsel %vm189, %v147, %v193
    %v198 = vsel %vm190, %v160, %v194
    %v199 = vsel %vm191, %v173, %v195
    %v200 = vsel %vm192, %v186, %v196
    %v201 = vpack.c.bf16 %v197, %v197
    %v202 = vpack.c.bf16 %v198, %v198
    %v203 = vpack.c.bf16 %v199, %v199
    %v204 = vpack.c.bf16 %v200, %v200
    %v205 = vld [vmem:[#allocation8] sm:$0xff]
    %v206 = vld [vmem:[#allocation8 + $0x8] sm:$0xff]
    %v207 = vld [vmem:[#allocation8 + $0x10] sm:$0xff]
    %v208 = vld [vmem:[#allocation8 + $0x18] sm:$0xff]
    %v209 = vld [vmem:[#allocation8 + $0x20] sm:$0xff]
    %v210 = vld [vmem:[#allocation8 + $0x28] sm:$0xff]
    %v211 = vld [vmem:[#allocation8 + $0x30] sm:$0xff]
    %v212 = vld [vmem:[#allocation8 + $0x38] sm:$0xff]
    %v213 = vld [vmem:[#allocation8 + $0x40] sm:$0xff]
    %v214 = vld [vmem:[#allocation8 + $0x48] sm:$0xff]
    %v215 = vld [vmem:[#allocation8 + $0x50] sm:$0xff]
    %v216 = vld [vmem:[#allocation8 + $0x58] sm:$0xff]
    %v217 = vld [vmem:[#allocation8 + $0x60] sm:$0xff]
    %v218 = vld [vmem:[#allocation8 + $0x68] sm:$0xff]
    %v219 = vld [vmem:[#allocation8 + $0x70] sm:$0xff]
    %v220 = vld [vmem:[#allocation8 + $0x78] sm:$0xff]
    %v221 = vld [vmem:[#allocation8 + $0x80] sm:$0xff]
    %v222 = vld [vmem:[#allocation8 + $0x88] sm:$0xff]
    %v223 = vld [vmem:[#allocation8 + $0x90] sm:$0xff]
    %v224 = vld [vmem:[#allocation8 + $0x98] sm:$0xff]
    %v225 = vld [vmem:[#allocation8 + $0xa0] sm:$0xff]
    %v226 = vld [vmem:[#allocation8 + $0xa8] sm:$0xff]
    %v227 = vld [vmem:[#allocation8 + $0xb0] sm:$0xff]
    %v228 = vld [vmem:[#allocation8 + $0xb8] sm:$0xff]
    %v229 = vld [vmem:[#allocation8 + $0xc0] sm:$0xff]
    %v230 = vld [vmem:[#allocation8 + $0xc8] sm:$0xff]
    %v231 = vld [vmem:[#allocation8 + $0xd0] sm:$0xff]
    %v232 = vld [vmem:[#allocation8 + $0xd8] sm:$0xff]
    %v233 = vld [vmem:[#allocation8 + $0xe0] sm:$0xff]
    %v234 = vld [vmem:[#allocation8 + $0xe8] sm:$0xff]
    %v235 = vld [vmem:[#allocation8 + $0xf0] sm:$0xff]
    %v236 = vld [vmem:[#allocation8 + $0xf8] sm:$0xff]
    %v237 = vld [vmem:[#allocation8 + $0x100] sm:$0xff]
    %v238 = vld [vmem:[#allocation8 + $0x108] sm:$0xff]
    %v239 = vld [vmem:[#allocation8 + $0x110] sm:$0xff]
    %v240 = vld [vmem:[#allocation8 + $0x118] sm:$0xff]
    %v241 = vld [vmem:[#allocation8 + $0x120] sm:$0xff]
    %v242 = vld [vmem:[#allocation8 + $0x128] sm:$0xff]
    %v243 = vld [vmem:[#allocation8 + $0x130] sm:$0xff]
    %v244 = vld [vmem:[#allocation8 + $0x138] sm:$0xff]
    %v245 = vld [vmem:[#allocation8 + $0x140] sm:$0xff]
    %v246 = vld [vmem:[#allocation8 + $0x148] sm:$0xff]
    %v247 = vld [vmem:[#allocation8 + $0x150] sm:$0xff]
    %v248 = vld [vmem:[#allocation8 + $0x158] sm:$0xff]
    %v249 = vld [vmem:[#allocation8 + $0x160] sm:$0xff]
    %v250 = vld [vmem:[#allocation8 + $0x168] sm:$0xff]
    %v251 = vld [vmem:[#allocation8 + $0x170] sm:$0xff]
    %v252 = vld [vmem:[#allocation8 + $0x178] sm:$0xff]
    %v253 = vld [vmem:[#allocation8 + $0x180] sm:$0xff]
    %v254 = vld [vmem:[#allocation8 + $0x188] sm:$0xff]
    %v255 = vld [vmem:[#allocation8 + $0x190] sm:$0xff]
    %v256 = vld [vmem:[#allocation8 + $0x198] sm:$0xff]
    %v257 = vld [vmem:[#allocation8 + $0x1a0] sm:$0xff]
    %v258 = vld [vmem:[#allocation8 + $0x1a8] sm:$0xff]
    %v259 = vld [vmem:[#allocation8 + $0x1b0] sm:$0xff]
    %v260 = vld [vmem:[#allocation8 + $0x1b8] sm:$0xff]
    %v261 = vld [vmem:[#allocation8 + $0x1c0] sm:$0xff]
    %v262 = vld [vmem:[#allocation8 + $0x1c8] sm:$0xff]
    %v263 = vld [vmem:[#allocation8 + $0x1d0] sm:$0xff]
    %v264 = vld [vmem:[#allocation8 + $0x1d8] sm:$0xff]
    %v265 = vld [vmem:[#allocation8 + $0x1e0] sm:$0xff]
    %v266 = vld [vmem:[#allocation8 + $0x1e8] sm:$0xff]
    %v267 = vld [vmem:[#allocation8 + $0x1f0] sm:$0xff]
    %v268 = vld [vmem:[#allocation8 + $0x1f8] sm:$0xff]
    %v269 = vld [vmem:[%s4] sm:$0x3]
    %v271 = vperm.slane %v269, 0
    %v272 = vperm.slane %v269, 1
    %v339 = vunpack.c.l.b16 %v205
    %v340 = vunpack.c.h.b16 %v205
    %v341 = vunpack.c.l.b16 %v206
    %v342 = vunpack.c.h.b16 %v206
    %v343 = vunpack.c.l.b16 %v207
    %v344 = vunpack.c.h.b16 %v207
    %v345 = vunpack.c.l.b16 %v208
    %v346 = vunpack.c.h.b16 %v208
    %v347 = vunpack.c.l.b16 %v209
    %v348 = vunpack.c.h.b16 %v209
    %v349 = vunpack.c.l.b16 %v210
    %v350 = vunpack.c.h.b16 %v210
    %v351 = vunpack.c.l.b16 %v211
    %v352 = vunpack.c.h.b16 %v211
    %v353 = vunpack.c.l.b16 %v212
    %v354 = vunpack.c.h.b16 %v212
    %v355 = vunpack.c.l.b16 %v213
    %v356 = vunpack.c.h.b16 %v213
    %v357 = vunpack.c.l.b16 %v214
    %v358 = vunpack.c.h.b16 %v214
    %v359 = vunpack.c.l.b16 %v215
    %v360 = vunpack.c.h.b16 %v215
    %v361 = vunpack.c.l.b16 %v216
    %v362 = vunpack.c.h.b16 %v216
    %v363 = vunpack.c.l.b16 %v217
    %v364 = vunpack.c.h.b16 %v217
    %v365 = vunpack.c.l.b16 %v218
    %v366 = vunpack.c.h.b16 %v218
    %v367 = vunpack.c.l.b16 %v219
    %v368 = vunpack.c.h.b16 %v219
    %v369 = vunpack.c.l.b16 %v220
    %v370 = vunpack.c.h.b16 %v220
    %v371 = vunpack.c.l.b16 %v221
    %v372 = vunpack.c.h.b16 %v221
    %v373 = vunpack.c.l.b16 %v222
    %v374 = vunpack.c.h.b16 %v222
    %v375 = vunpack.c.l.b16 %v223
    %v376 = vunpack.c.h.b16 %v223
    %v377 = vunpack.c.l.b16 %v224
    %v378 = vunpack.c.h.b16 %v224
    %v379 = vunpack.c.l.b16 %v225
    %v380 = vunpack.c.h.b16 %v225
    %v381 = vunpack.c.l.b16 %v226
    %v382 = vunpack.c.h.b16 %v226
    %v383 = vunpack.c.l.b16 %v227
    %v384 = vunpack.c.h.b16 %v227
    %v385 = vunpack.c.l.b16 %v228
    %v386 = vunpack.c.h.b16 %v228
    %v387 = vunpack.c.l.b16 %v229
    %v388 = vunpack.c.h.b16 %v229
    %v389 = vunpack.c.l.b16 %v230
    %v390 = vunpack.c.h.b16 %v230
    %v391 = vunpack.c.l.b16 %v231
    %v392 = vunpack.c.h.b16 %v231
    %v393 = vunpack.c.l.b16 %v232
    %v394 = vunpack.c.h.b16 %v232
    %v395 = vunpack.c.l.b16 %v233
    %v396 = vunpack.c.h.b16 %v233
    %v397 = vunpack.c.l.b16 %v234
    %v398 = vunpack.c.h.b16 %v234
    %v399 = vunpack.c.l.b16 %v235
    %v400 = vunpack.c.h.b16 %v235
    %v401 = vunpack.c.l.b16 %v236
    %v402 = vunpack.c.h.b16 %v236
    %v403 = vunpack.c.l.b16 %v237
    %v404 = vunpack.c.h.b16 %v237
    %v405 = vunpack.c.l.b16 %v238
    %v406 = vunpack.c.h.b16 %v238
    %v407 = vunpack.c.l.b16 %v239
    %v408 = vunpack.c.h.b16 %v239
    %v409 = vunpack.c.l.b16 %v240
    %v410 = vunpack.c.h.b16 %v240
    %v411 = vunpack.c.l.b16 %v241
    %v412 = vunpack.c.h.b16 %v241
    %v413 = vunpack.c.l.b16 %v242
    %v414 = vunpack.c.h.b16 %v242
    %v415 = vunpack.c.l.b16 %v243
    %v416 = vunpack.c.h.b16 %v243
    %v417 = vunpack.c.l.b16 %v244
    %v418 = vunpack.c.h.b16 %v244
    %v419 = vunpack.c.l.b16 %v245
    %v420 = vunpack.c.h.b16 %v245
    %v421 = vunpack.c.l.b16 %v246
    %v422 = vunpack.c.h.b16 %v246
    %v423 = vunpack.c.l.b16 %v247
    %v424 = vunpack.c.h.b16 %v247
    %v425 = vunpack.c.l.b16 %v248
    %v426 = vunpack.c.h.b16 %v248
    %v427 = vunpack.c.l.b16 %v249
    %v428 = vunpack.c.h.b16 %v249
    %v429 = vunpack.c.l.b16 %v250
    %v430 = vunpack.c.h.b16 %v250
    %v431 = vunpack.c.l.b16 %v251
    %v432 = vunpack.c.h.b16 %v251
    %v433 = vunpack.c.l.b16 %v252
    %v434 = vunpack.c.h.b16 %v252
    %v435 = vunpack.c.l.b16 %v253
    %v436 = vunpack.c.h.b16 %v253
    %v437 = vunpack.c.l.b16 %v254
    %v438 = vunpack.c.h.b16 %v254
    %v439 = vunpack.c.l.b16 %v255
    %v440 = vunpack.c.h.b16 %v255
    %v441 = vunpack.c.l.b16 %v256
    %v442 = vunpack.c.h.b16 %v256
    %v443 = vunpack.c.l.b16 %v257
    %v444 = vunpack.c.h.b16 %v257
    %v445 = vunpack.c.l.b16 %v258
    %v446 = vunpack.c.h.b16 %v258
    %v447 = vunpack.c.l.b16 %v259
    %v448 = vunpack.c.h.b16 %v259
    %v449 = vunpack.c.l.b16 %v260
    %v450 = vunpack.c.h.b16 %v260
    %v451 = vunpack.c.l.b16 %v261
    %v452 = vunpack.c.h.b16 %v261
    %v453 = vunpack.c.l.b16 %v262
    %v454 = vunpack.c.h.b16 %v262
    %v455 = vunpack.c.l.b16 %v263
    %v456 = vunpack.c.h.b16 %v263
    %v457 = vunpack.c.l.b16 %v264
    %v458 = vunpack.c.h.b16 %v264
    %v459 = vunpack.c.l.b16 %v265
    %v460 = vunpack.c.h.b16 %v265
    %v461 = vunpack.c.l.b16 %v266
    %v462 = vunpack.c.h.b16 %v266
    %v463 = vunpack.c.l.b16 %v267
    %v464 = vunpack.c.h.b16 %v267
    %v465 = vunpack.c.l.b16 %v268
    %v466 = vunpack.c.h.b16 %v268
    %v467 = vpack.c.b16 %v341, %v339
    %v468 = vpack.c.b16 %v342, %v340
    %v469 = vpack.c.b16 %v345, %v343
    %v470 = vpack.c.b16 %v346, %v344
    %v471 = vpack.c.b16 %v349, %v347
    %v472 = vpack.c.b16 %v350, %v348
    %v473 = vpack.c.b16 %v353, %v351
    %v474 = vpack.c.b16 %v354, %v352
    %v475 = vpack.c.b16 %v357, %v355
    %v476 = vpack.c.b16 %v358, %v356
    %v477 = vpack.c.b16 %v361, %v359
    %v478 = vpack.c.b16 %v362, %v360
    %v479 = vpack.c.b16 %v365, %v363
    %v480 = vpack.c.b16 %v366, %v364
    %v481 = vpack.c.b16 %v369, %v367
    %v482 = vpack.c.b16 %v370, %v368
    %v483 = vpack.c.b16 %v373, %v371
    %v484 = vpack.c.b16 %v374, %v372
    %v485 = vpack.c.b16 %v377, %v375
    %v486 = vpack.c.b16 %v378, %v376
    %v487 = vpack.c.b16 %v381, %v379
    %v488 = vpack.c.b16 %v382, %v380
    %v489 = vpack.c.b16 %v385, %v383
    %v490 = vpack.c.b16 %v386, %v384
    %v491 = vpack.c.b16 %v389, %v387
    %v492 = vpack.c.b16 %v390, %v388
    %v493 = vpack.c.b16 %v393, %v391
    %v494 = vpack.c.b16 %v394, %v392
    %v495 = vpack.c.b16 %v397, %v395
    %v496 = vpack.c.b16 %v398, %v396
    %v497 = vpack.c.b16 %v401, %v399
    %v498 = vpack.c.b16 %v402, %v400
    %v499 = vpack.c.b16 %v405, %v403
    %v500 = vpack.c.b16 %v406, %v404
    %v501 = vpack.c.b16 %v409, %v407
    %v502 = vpack.c.b16 %v410, %v408
    %v503 = vpack.c.b16 %v413, %v411
    %v504 = vpack.c.b16 %v414, %v412
    %v505 = vpack.c.b16 %v417, %v415
    %v506 = vpack.c.b16 %v418, %v416
    %v507 = vpack.c.b16 %v421, %v419
    %v508 = vpack.c.b16 %v422, %v420
    %v509 = vpack.c.b16 %v425, %v423
    %v510 = vpack.c.b16 %v426, %v424
    %v511 = vpack.c.b16 %v429, %v427
    %v512 = vpack.c.b16 %v430, %v428
    %v513 = vpack.c.b16 %v433, %v431
    %v514 = vpack.c.b16 %v434, %v432
    %v515 = vpack.c.b16 %v437, %v435
    %v516 = vpack.c.b16 %v438, %v436
    %v517 = vpack.c.b16 %v441, %v439
    %v518 = vpack.c.b16 %v442, %v440
    %v519 = vpack.c.b16 %v445, %v443
    %v520 = vpack.c.b16 %v446, %v444
    %v521 = vpack.c.b16 %v449, %v447
    %v522 = vpack.c.b16 %v450, %v448
    %v523 = vpack.c.b16 %v453, %v451
    %v524 = vpack.c.b16 %v454, %v452
    %v525 = vpack.c.b16 %v457, %v455
    %v526 = vpack.c.b16 %v458, %v456
    %v527 = vpack.c.b16 %v461, %v459
    %v528 = vpack.c.b16 %v462, %v460
    %v529 = vpack.c.b16 %v465, %v463
    %v530 = vpack.c.b16 %v466, %v464
    %595 = vmatpush.bf16.msra.mxu0 %v481
    %596 = vmatpush.bf16.msra.mxu0 %v479
    %597 = vmatpush.bf16.msra.mxu0 %v477
    %598 = vmatpush.bf16.msra.mxu0 %v475
    %599 = vmatpush.bf16.msra.mxu0 %v473
    %600 = vmatpush.bf16.msra.mxu0 %v471
    %601 = vmatpush.bf16.msra.mxu0 %v469
    %602 = vmatpush.bf16.msra.mxu0 %v467
    %603 = vmatmul.bf16.gmra.mxu0 %v201
    %v604 = vpop.f32.mrf.mxu0
    %v605 = vadd.f32 %v271, %v604
    %v606 = vpop.f32.mrf.mxu0
    %607 = vdwg.mxu0
    %608 = vmatpush.bf16.msra.mxu0 %v497
    %609 = vmatpush.bf16.msra.mxu0 %v495
    %610 = vmatpush.bf16.msra.mxu0 %v493
    %611 = vmatpush.bf16.msra.mxu0 %v491
    %612 = vmatpush.bf16.msra.mxu0 %v489
    %613 = vmatpush.bf16.msra.mxu0 %v487
    %614 = vmatpush.bf16.msra.mxu0 %v485
    %615 = vmatpush.bf16.msra.mxu0 %v483
    %616 = vmatmul.bf16.gmra.mxu0 %v202
    %v617 = vpop.f32.mrf.mxu0
    %v618 = vadd.f32 %v605, %v617
    %v619 = vpop.f32.mrf.mxu0
    %620 = vdwg.mxu0
    %621 = vmatpush.bf16.msra.mxu0 %v513
    %622 = vmatpush.bf16.msra.mxu0 %v511
    %623 = vmatpush.bf16.msra.mxu0 %v509
    %624 = vmatpush.bf16.msra.mxu0 %v507
    %625 = vmatpush.bf16.msra.mxu0 %v505
    %626 = vmatpush.bf16.msra.mxu0 %v503
    %627 = vmatpush.bf16.msra.mxu0 %v501
    %628 = vmatpush.bf16.msra.mxu0 %v499
    %629 = vmatmul.bf16.gmra.mxu0 %v203
    %v630 = vpop.f32.mrf.mxu0
    %v631 = vadd.f32 %v618, %v630
    %v632 = vpop.f32.mrf.mxu0
    %633 = vdwg.mxu0
    %634 = vmatpush.bf16.msra.mxu0 %v529
    %635 = vmatpush.bf16.msra.mxu0 %v527
    %636 = vmatpush.bf16.msra.mxu0 %v525
    %637 = vmatpush.bf16.msra.mxu0 %v523
    %638 = vmatpush.bf16.msra.mxu0 %v521
    %639 = vmatpush.bf16.msra.mxu0 %v519
    %640 = vmatpush.bf16.msra.mxu0 %v517
    %641 = vmatpush.bf16.msra.mxu0 %v515
    %642 = vmatmul.bf16.gmra.mxu0 %v204
    %v643 = vpop.f32.mrf.mxu0
    %v644 = vadd.f32 %v631, %v643
    %v645 = vpop.f32.mrf.mxu0
    %646 = vdwg.mxu0
    %647 = vmatpush.bf16.msra.mxu0 %v482
    %648 = vmatpush.bf16.msra.mxu0 %v480
    %649 = vmatpush.bf16.msra.mxu0 %v478
    %650 = vmatpush.bf16.msra.mxu0 %v476
    %651 = vmatpush.bf16.msra.mxu0 %v474
    %652 = vmatpush.bf16.msra.mxu0 %v472
    %653 = vmatpush.bf16.msra.mxu0 %v470
    %654 = vmatpush.bf16.msra.mxu0 %v468
    %655 = vmatmul.bf16.gmra.mxu0 %v201
    %v656 = vpop.f32.mrf.mxu0
    %v657 = vadd.f32 %v272, %v656
    %v658 = vpop.f32.mrf.mxu0
    %659 = vdwg.mxu0
    %660 = vmatpush.bf16.msra.mxu0 %v498
    %661 = vmatpush.bf16.msra.mxu0 %v496
    %662 = vmatpush.bf16.msra.mxu0 %v494
    %663 = vmatpush.bf16.msra.mxu0 %v492
    %664 = vmatpush.bf16.msra.mxu0 %v490
    %665 = vmatpush.bf16.msra.mxu0 %v488
    %666 = vmatpush.bf16.msra.mxu0 %v486
    %667 = vmatpush.bf16.msra.mxu0 %v484
    %668 = vmatmul.bf16.gmra.mxu0 %v202
    %v669 = vpop.f32.mrf.mxu0
    %v670 = vadd.f32 %v657, %v669
    %v671 = vpop.f32.mrf.mxu0
    %672 = vdwg.mxu0
    %673 = vmatpush.bf16.msra.mxu0 %v514
    %674 = vmatpush.bf16.msra.mxu0 %v512
    %675 = vmatpush.bf16.msra.mxu0 %v510
    %676 = vmatpush.bf16.msra.mxu0 %v508
    %677 = vmatpush.bf16.msra.mxu0 %v506
    %678 = vmatpush.bf16.msra.mxu0 %v504
    %679 = vmatpush.bf16.msra.mxu0 %v502
    %680 = vmatpush.bf16.msra.mxu0 %v500
    %681 = vmatmul.bf16.gmra.mxu0 %v203
    %v682 = vpop.f32.mrf.mxu0
    %v683 = vadd.f32 %v670, %v682
    %v684 = vpop.f32.mrf.mxu0
    %685 = vdwg.mxu0
    %686 = vmatpush.bf16.msra.mxu0 %v530
    %687 = vmatpush.bf16.msra.mxu0 %v528
    %688 = vmatpush.bf16.msra.mxu0 %v526
    %689 = vmatpush.bf16.msra.mxu0 %v524
    %690 = vmatpush.bf16.msra.mxu0 %v522
    %691 = vmatpush.bf16.msra.mxu0 %v520
    %692 = vmatpush.bf16.msra.mxu0 %v518
    %693 = vmatpush.bf16.msra.mxu0 %v516
    %694 = vmatmul.bf16.gmra.mxu0 %v204
    %v695 = vpop.f32.mrf.mxu0
    %v696 = vadd.f32 %v683, %v695
    %v697 = vpop.f32.mrf.mxu0
    %698 = vdwg.mxu0
    %vm699 = vcmp.gt.f32.partialorder %v644, 0.0
    %vm700 = vcmp.gt.f32.partialorder %v696, 0.0
    %v701 = vmul.f32 %v644, 0.2
    %v702 = vmul.f32 %v696, 0.2
    %v703 = vsel %vm699, %v644, %v701
    %v704 = vsel %vm700, %v696, %v702
    %v705 = vld [vmem:[%s5] sm:$0x3]
    %v707 = vperm.slane %v705, 0
    %v708 = vperm.slane %v705, 1
    %v711 = vmul.f32 %v703, %v707
    %v712 = vmul.f32 %v704, %v708
    %v713 = vadd.f32 %v711, %v712
    %714 = vadd.xlane.f32.xlu0 %v713
    %v715 = vpop.xlane.xlu0 %714
    %v716 = vld [vmem:[#allocation2] sm:$0x1]
    %v718 = vperm.slane %v716, 0
    %v720 = vadd.f32 %v715, %v718
    %v721 = vsub.f32 0.0, %v720
    %v722 = vmul.f32 %v721, 1.442695
    %v723 = vpow.pop %v722
    %v724 = vadd.f32 %v723, 1.0
    %v725 = vrcp.pop %v724
    %vm726 = vcmask 7168
    %727 = vst.msk [vmem:[%s7] sm:$0xff] %vm726, %v725
    // Predicated region
    $region46: #{tpu_custom_call.1} parent=1 // pred_check
      _
    $region47: #{tpu_custom_call.1} parent=1 // pred_check_branch
      %729 = sbr.rel (0) target = $region49
    $region48: #{tpu_custom_call.1} parent=1 // pred_region
      _
    $region49: #{tpu_custom_call.1} parent=1 // pred_fallthru
      _
    // Predicated region
    $region50: #{tpu_custom_call.1} parent=1 // pred_check
      _
    $region51: #{tpu_custom_call.1} parent=1 // pred_check_branch
      %731 = sbr.rel (0) target = $region53
    $region52: #{tpu_custom_call.1} parent=1 // pred_region
      _
    $region53: #{tpu_custom_call.1} parent=1 // pred_fallthru
      _
    %732 = vsyncpa [#allocation4], 1
    %733 = vsyncpa [#allocation6], 1
    %734 = vsyncpa [#allocation9], 1

</llo_original>
